<compile_context>
chip_gen: v5e
topology: v5e:2x2
jax: 0.10.0
libtpu: 0.0.40
codegen_flags: <defaults>
</compile_context>

<pallas_src>
import functools

import jax
import jax.numpy as jnp
from jax import lax
from jax.experimental import pallas as pl
from jax.experimental.pallas import tpu as pltpu


_SUBLANES = 8
_LANES = 128
_FALLBACK_WIDTH = 512        # lane-dense width for the rare repack fallback
_MAX_TILE_WIDTH = 65536      # widest row we row-tile directly (f32, padded)


def _round_up(a, b):
    return -(-a // b) * b


def _round_down(a, b):
    return (a // b) * b


# ---------------------------------------------------------------------------
# In-kernel helpers: staged keepdims reductions (lane reduce then sublane
# reduce) producing a (1, 1) value that broadcasts cleanly against the tile.
# ---------------------------------------------------------------------------
def _max_all(x):
    return jnp.max(jnp.max(x, axis=1, keepdims=True), axis=0, keepdims=True)


def _sum_all(x):
    return jnp.sum(jnp.sum(x, axis=1, keepdims=True), axis=0, keepdims=True)


def _vmem_capacity_bytes():
    """Per-TensorCore VMEM capacity; conservative (v7x) default if unknown."""
    try:
        info = pltpu.get_tpu_info()
        cap = int(getattr(info, "vmem_capacity_bytes", 0) or 0)
        if cap > 0:
            return cap
    except Exception:
        pass
    return 64 * 1024 * 1024


# ---------------------------------------------------------------------------
# Kernels
# ---------------------------------------------------------------------------
def _softmax_single_block_kernel(x_ref, o_ref):
    """Whole (small) slab resident in VMEM; one pass, 2N HBM traffic."""
    x = x_ref[...].astype(jnp.float32)
    c = _max_all(x)                                    # (1, 1) global max
    e = jnp.exp(x - c)                                 # EUP transcendental
    inv = pl.reciprocal(_sum_all(e), approx=False)     # one reciprocal
    o_ref[...] = (e * inv).astype(o_ref.dtype)


def _softmax_partials_kernel(x_ref, m_ref, l_ref, *, row_tile, valid_rows,
                             mask_rows):
    """Per-tile partials: m_i = max(tile), l_i = sum(exp(tile - m_i)).

    Each grid step writes its own (1, 8, 128) broadcast stat block, so the
    grid axis is truly "parallel" (both v7x TensorCores).  Out-of-bounds rows
    of a ragged last tile are masked to -inf (neutral for max and sum-exp).
    """
    x = x_ref[...].astype(jnp.float32)
    if mask_rows:  # static Python flag
        row = (pl.program_id(0) * row_tile
               + lax.broadcasted_iota(jnp.int32, x.shape, 0))
        x = jnp.where(row < valid_rows, x, -jnp.inf)
    m = _max_all(x)                                    # (1, 1)
    l = _sum_all(jnp.exp(x - m))                       # (1, 1)
    m_ref[...] = jnp.broadcast_to(m, m_ref.shape)
    l_ref[...] = jnp.broadcast_to(l, l_ref.shape)


def _softmax_normalize_kernel(c_ref, x_ref, o_ref):
    """o = exp(x - c) with the folded constant c = m + log(l) from SMEM.

    Out-of-bounds rows of a ragged last tile produce garbage but their writes
    are dropped by Pallas, so no masking is needed here.
    """
    c = c_ref[0]
    o_ref[...] = jnp.exp(x_ref[...].astype(jnp.float32) - c).astype(o_ref.dtype)


# ---------------------------------------------------------------------------
# Wrapper
# ---------------------------------------------------------------------------
def softmax_stable(x: jax.Array,
                   *,
                   row_tile: int | None = None,
                   single_block_max_elems: int | None = None) -> jax.Array:
    """Global numerically-stable softmax matching the PyTorch module."""
    orig_shape = x.shape
    n = int(x.size)
    if n == 0:
        return x

    # Per-generation budgets (v5e/v6e: 128 MiB VMEM; v7x: 64 MiB).
    cap = _vmem_capacity_bytes()
    big_vmem = cap >= 100 * 1024 * 1024
    vmem_limit = (96 if big_vmem else 48) * 1024 * 1024
    tile_target_elems = (2 if big_vmem else 1) * 1024 * 1024   # 8 / 4 MiB f32
    if single_block_max_elems is None:
        single_block_max_elems = (4 if big_vmem else 2) * 1024 * 1024
    if row_tile is not None:
        assert row_tile > 0 and row_tile % _SUBLANES == 0

    # Zero-copy 2-D view: keep the original last dim, collapse leading dims.
    if x.ndim == 2:
        x2 = x
    elif x.ndim > 2:
        x2 = x.reshape(-1, x.shape[-1])
    else:
        x2 = x.reshape(1, n)
    sliced_tail = False

    rows, width = x2.shape
    padded_elems = _round_up(rows, _SUBLANES) * _round_up(width, _LANES)

    # ---- small path: single resident block, one pass, no repack ----------
    if padded_elems <= single_block_max_elems:
        out2 = pl.pallas_call(
            _softmax_single_block_kernel,
            out_shape=jax.ShapeDtypeStruct(x2.shape, x.dtype),
            in_specs=[pl.BlockSpec(x2.shape, lambda: (0, 0))],
            out_specs=pl.BlockSpec(x2.shape, lambda: (0, 0)),
            compiler_params=pltpu.CompilerParams(
                vmem_limit_bytes=vmem_limit),
        )(x2)
        return out2.reshape(orig_shape)

    # ---- tiled two-pass path ----------------------------------------------
    if _round_up(width, _LANES) > _MAX_TILE_WIDTH:
        # Corner case (e.g. one enormous row / huge 1-D vector): repack into a
        # lane-dense (rows, 512) slab.  Tail padded with -inf (neutral for max
        # and sum-exp); assumes a floating-point dtype.  Costs one extra copy.
        flat = x.reshape(-1)
        pad = (-n) % _FALLBACK_WIDTH
        if pad:
            flat = jnp.concatenate(
                [flat, jnp.full((pad,), -jnp.inf, dtype=flat.dtype)])
            sliced_tail = True
        x2 = flat.reshape(-1, _FALLBACK_WIDTH)
        rows, width = x2.shape

    pw = _round_up(width, _LANES)                    # padded lane footprint
    if row_tile is None:
        row_tile = max(_SUBLANES,
                       _round_down(tile_target_elems // pw, _SUBLANES))
    row_tile = min(row_tile, _round_up(rows, _SUBLANES))
    grid = pl.cdiv(rows, row_tile)
    mask_rows = (rows % row_tile) != 0

    # Pass 1: per-tile (m_i, l_i) partials, fully parallel across tiles.
    stats_shape = jax.ShapeDtypeStruct((grid, _SUBLANES, _LANES), jnp.float32)
    m_out, l_out = pl.pallas_call(
        functools.partial(_softmax_partials_kernel, row_tile=row_tile,
                          valid_rows=rows, mask_rows=mask_rows),
        out_shape=(stats_shape, stats_shape),
        grid=(grid,),
        in_specs=[pl.BlockSpec((row_tile, width), lambda i: (i, 0))],
        out_specs=(pl.BlockSpec((1, _SUBLANES, _LANES), lambda i: (i, 0, 0)),
                   pl.BlockSpec((1, _SUBLANES, _LANES), lambda i: (i, 0, 0))),
        compiler_params=pltpu.CompilerParams(
            dimension_semantics=("parallel",),
            vmem_limit_bytes=vmem_limit),
    )(x2)

    # Tiny grid-length combine in plain XLA (negligible), folding the
    # normalization into one scalar: softmax(x) = exp(x - (m + log l)).
    m_vec = m_out[:, 0, 0]
    l_vec = l_out[:, 0, 0]
    m = jnp.max(m_vec)
    l = jnp.sum(l_vec * jnp.exp(m_vec - m))
    c = (m + jnp.log(l)).reshape(1).astype(jnp.float32)

    # Pass 2: o = exp(x - c), tile-parallel, c delivered via SMEM.
    out2 = pl.pallas_call(
        _softmax_normalize_kernel,
        out_shape=jax.ShapeDtypeStruct(x2.shape, x.dtype),
        grid=(grid,),
        in_specs=[pl.BlockSpec(memory_space=pltpu.MemorySpace.SMEM),
                  pl.BlockSpec((row_tile, width), lambda i: (i, 0))],
        out_specs=pl.BlockSpec((row_tile, width), lambda i: (i, 0)),
        compiler_params=pltpu.CompilerParams(
            dimension_semantics=("parallel",),
            vmem_limit_bytes=vmem_limit),
    )(c, x2)

    if sliced_tail:
        return out2.reshape(-1)[:n].reshape(orig_shape)
    return out2.reshape(orig_shape)


def _reference(x):
    xf = x.astype(jnp.float32)
    c = jnp.max(xf)
    e = jnp.exp(xf - c)
    return (e / jnp.sum(e)).astype(x.dtype)


if __name__ == "__main__":
    key = jax.random.PRNGKey(0)
    k1, k2, k3, k4 = jax.random.split(key, 4)

    # 1) Module-scale input (seq=8, hidden=32): zero-copy single-block path.
    x1 = jax.random.normal(k1, (8, 32), dtype=jnp.float32)
    o1 = jax.block_until_ready(softmax_stable(x1))
    r1 = _reference(x1)
    assert o1.shape == x1.shape and o1.dtype == x1.dtype
    assert jnp.allclose(o1, r1, atol=1e-6, rtol=1e-5)
    assert jnp.allclose(jnp.sum(o1), 1.0, atol=1e-5)

    # 2) Forced tiled path: clean 8-tile grid, parallel partials + combine.
    x2 = jax.random.normal(k2, (64, 384), dtype=jnp.float32)
    o2 = jax.block_until_ready(
        softmax_stable(x2, row_tile=8, single_block_max_elems=0))
    r2 = _reference(x2)
    assert o2.shape == x2.shape and o2.dtype == x2.dtype
    assert jnp.allclose(o2, r2, atol=1e-6, rtol=1e-4)
    assert jnp.allclose(jnp.sum(o2), 1.0, atol=1e-4)

    # 3) Forced tiled path: ragged last row tile (in-kernel row masking) and
    #    a non-128-multiple last dim (block last dim == full dim, no repack).
    x3 = jax.random.normal(k3, (13, 37), dtype=jnp.float32)
    o3 = jax.block_until_ready(
        softmax_stable(x3, row_tile=8, single_block_max_elems=0))
    r3 = _reference(x3)
    assert o3.shape == x3.shape
    assert jnp.allclose(o3, r3, atol=1e-6, rtol=1e-4)
    assert jnp.allclose(jnp.sum(o3), 1.0, atol=1e-5)

    # 4) Forced tiled path through the wide-row repack fallback (1-D input
    #    with -inf tail padding + output slice).
    x4 = jax.random.normal(k4, (70000,), dtype=jnp.float32)
    o4 = jax.block_until_ready(
        softmax_stable(x4, row_tile=16, single_block_max_elems=0))
    r4 = _reference(x4)
    assert o4.shape == x4.shape
    assert jnp.allclose(o4, r4, atol=1e-7, rtol=1e-4)
    assert jnp.allclose(jnp.sum(o4), 1.0, atol=1e-4)

    print("KERNEL_OK")
</pallas_src>

<mosaic_0001>
module attributes {stable_mosaic.version = 11 : i64} {
  func.func @_softmax_single_block_kernel(%arg0: memref<8x32xf32, #tpu.memory_space<vmem>>, %arg1: memref<8x32xf32, #tpu.memory_space<vmem>>) attributes {dimension_semantics = [], scalar_prefetch = 0 : i64, scratch_operands = 0 : i64, tpu.core_type = #tpu.core_type<tc>} {
    %c0 = arith.constant 0 : index
    %c0_0 = arith.constant 0 : index
    %0 = vector.load %arg0[%c0, %c0_0] : memref<8x32xf32, #tpu.memory_space<vmem>>, vector<8x32xf32>
    %cst = arith.constant dense<0xFF800000> : vector<8xf32>
    %1 = vector.multi_reduction <maximumf>, %0, %cst [1] : vector<8x32xf32> to vector<8xf32>
    %2 = vector.shape_cast %1 : vector<8xf32> to vector<8x1xf32>
    %cst_1 = arith.constant dense<0xFF800000> : vector<1xf32>
    %3 = vector.multi_reduction <maximumf>, %2, %cst_1 [0] : vector<8x1xf32> to vector<1xf32>
    %4 = vector.shape_cast %3 : vector<1xf32> to vector<1x1xf32>
    %5 = vector.broadcast %4 : vector<1x1xf32> to vector<8x32xf32>
    %6 = arith.subf %0, %5 : vector<8x32xf32>
    %7 = math.exp %6 : vector<8x32xf32>
    %cst_2 = arith.constant dense<0.000000e+00> : vector<8xf32>
    %8 = vector.multi_reduction <add>, %7, %cst_2 [1] : vector<8x32xf32> to vector<8xf32>
    %9 = vector.shape_cast %8 : vector<8xf32> to vector<8x1xf32>
    %cst_3 = arith.constant dense<0.000000e+00> : vector<1xf32>
    %10 = vector.multi_reduction <add>, %9, %cst_3 [0] : vector<8x1xf32> to vector<1xf32>
    %11 = vector.shape_cast %10 : vector<1xf32> to vector<1x1xf32>
    %12 = tpu.reciprocal %11 : vector<1x1xf32> -> vector<1x1xf32>
    %13 = vector.broadcast %12 : vector<1x1xf32> to vector<8x32xf32>
    %14 = arith.mulf %7, %13 : vector<8x32xf32>
    %c0_4 = arith.constant 0 : index
    %c0_5 = arith.constant 0 : index
    %15 = vector.load %arg1[%c0_4, %c0_5] : memref<8x32xf32, #tpu.memory_space<vmem>>, vector<8x32xf32>
    tpu.vector_store %arg1[%c0_4, %c0_5], %14 {strides = array<i32>} : memref<8x32xf32, #tpu.memory_space<vmem>>, vector<8x32xf32>,
    return
  }
}

</mosaic_0001>

<llo_original>
// kernel: tpu_custom_call.1
$region0: #{tpu_custom_call.1}
  #allocation0 [shape = 'u32[]', space=smem, size = 0x4, offset = 0x4, fixed_abs, tag = 'smem constant byte address 0x4 - core index']
  #allocation1 [shape = 'u32[72,128]{1,0:T(1,128)}', space=vmem, size = 0x9000, scoped, tag = 'internal scratch']
  %s0 = inlined_call_operand.hbm [shape: f32[8,32], index: 0, kind: input, shape index: {}]
  %s1 = inlined_call_operand.hbm [shape: f32[8,32], index: 1, kind: output, shape index: {}]
  %s2 = sld [smem:[#allocation0]]
  $region18: #{tpu_custom_call.1} parent=0
    _
  %s4 = ssub.s32 1, %s2
  %s5 = scalar_select 0, %s4, %s2
  $region1: #{tpu_custom_call.1} parent=0
    #allocation2 [shape = 'u8[4096]{0}', space=vmem, size = 0x1000, scoped, tag = 'input window, operand 0, single buffered']
    #allocation3 [shape = 's32[1]{0}', space=sflag, size = 0x4, scoped, tag = 'scoped memory for tpu_custom_call.1']
    #allocation4 [shape = 's32[1]{0}', space=sflag, size = 0x4, scoped, tag = 'scoped memory for tpu_custom_call.1']
    #allocation5 [shape = 'u8[4096]{0}', space=vmem, size = 0x1000, scoped, tag = 'output window, operand 0, single buffered']
    %6 = vsyncpa [#allocation3], 0
    %7 = vsyncpa [#allocation4], 0
    // Predicated region
    $region2: #{tpu_custom_call.1} parent=1 // pred_check
      _
    $region3: #{tpu_custom_call.1} parent=1 // pred_check_branch
      %9 = sbr.rel (0) target = $region5
    $region4: #{tpu_custom_call.1} parent=1 // pred_region
      %11 = vsyncadd [#allocation3], 0
      %s13 = sshll.u32 %s0, 4
      %s14 = int_to_ptr.hbm [resolvable:$true] %s13
      %s15 = sshll.u32 [#allocation2], 4
      %s16 = int_to_ptr.vmem [resolvable:$true] %s15
      %18 = dma.hbm_to_vmem [thread:$0]  %s14, 128, %s16, [#allocation3]
    $region5: #{tpu_custom_call.1} parent=1 // pred_fallthru
      _
    // Predicated region
    $region6: #{tpu_custom_call.1} parent=1 // pred_check
      _
    $region7: #{tpu_custom_call.1} parent=1 // pred_check_branch
      %20 = sbr.rel (0) target = $region9
    $region8: #{tpu_custom_call.1} parent=1 // pred_region
      %22 = dma.done [#allocation3], 128
    $region9: #{tpu_custom_call.1} parent=1 // pred_fallthru
      _
    %v23 = vld [vmem:[#allocation2] sm:$0xff]
    %vm24 = vcmask 261120
    %v25 = vsel %vm24, %v23, -inf
    %26 = vmax.xlane.f32.xlu0 %v25
    %v27 = vpop.xlane.xlu0 %26
    %v28 = vrot.slane %v27, 4
    %v29 = vmax.f32 %v27, %v28
    %v30 = vrot.slane %v29, 2
    %v31 = vmax.f32 %v29, %v30
    %v32 = vrot.slane %v31, 1
    %v33 = vmax.f32 %v31, %v32
    %v34 = vsub.f32 %v23, %v33
    %v35 = vmul.f32 %v34, 1.442695
    %v36 = vpow.pop %v35
    %v37 = vsel %vm24, %v36, 0.0
    %38 = vadd.xlane.f32.xlu0 %v37
    %v39 = vpop.xlane.xlu0 %38
    %v40 = vrot.slane %v39, 4
    %v41 = vadd.f32 %v39, %v40
    %v42 = vrot.slane %v41, 2
    %v43 = vadd.f32 %v41, %v42
    %v44 = vrot.slane %v43, 1
    %v45 = vadd.f32 %v43, %v44
    %v46 = vrcp.pop %v45
    %v47 = vmul.f32 %v45, %v46
    %v48 = vsub.f32 1.0, %v47
    %v49 = vmul.f32 %v46, %v48
    %v50 = vadd.f32 %v46, %v49
    %vm51 = vweird.f32 %v45
    %vm52 = vweird.f32 %v46
    %vm53 = vmor %vm51, %vm52
    %v54 = vsel %vm53, %v46, %v50
    %v55 = vand.u32 2147483647, %v45
    %vm56 = vcmp.eq.f32.partialorder %v55, 8.507059e+37
    %v57 = vand.u32 %v45, 2147483648
    %v58 = vor.u32 1.1754944e-38, %v57
    %v59 = vsel %vm56, %v58, %v54
    %v60 = vmul.f32 %v36, %v59
    %61 = vst.msk [vmem:[#allocation5] sm:$0xff] %vm24, %v60
    // Predicated region
    $region10: #{tpu_custom_call.1} parent=1 // pred_check
      _
    $region11: #{tpu_custom_call.1} parent=1 // pred_check_branch
      %63 = sbr.rel (0) target = $region13
    $region12: #{tpu_custom_call.1} parent=1 // pred_region
      %65 = vsyncadd [#allocation4], 0
      %s67 = sshll.u32 [#allocation5], 4
      %s68 = int_to_ptr.vmem [resolvable:$true] %s67
      %s69 = sshll.u32 %s1, 4
      %s70 = int_to_ptr.hbm [resolvable:$true] %s69
      %72 = dma.vmem_to_hbm [thread:$0]  %s68, 128, %s70, [#allocation4]
    $region13: #{tpu_custom_call.1} parent=1 // pred_fallthru
      _
    // Predicated region
    $region14: #{tpu_custom_call.1} parent=1 // pred_check
      _
    $region15: #{tpu_custom_call.1} parent=1 // pred_check_branch
      %74 = sbr.rel (0) target = $region17
    $region16: #{tpu_custom_call.1} parent=1 // pred_region
      %76 = dma.done [#allocation4], 128
    $region17: #{tpu_custom_call.1} parent=1 // pred_fallthru
      _
    %77 = vsyncpa [#allocation3], 1
    %78 = vsyncpa [#allocation4], 1

</llo_original>
